<compile_context>
chip_gen: v7x
topology: tpu7x:2x2x1
jax: 0.10.0
libtpu: 0.0.40
codegen_flags: <defaults>
</compile_context>

<pallas_src>
import functools
import math

import jax
import jax.numpy as jnp
from jax import lax
from jax.experimental import pallas as pl
from jax.experimental.pallas import tpu as pltpu


# Contract the last dim of both operands (A @ B.T form, K-last on both sides
# -> MXU transposed-RHS path, no standalone transpose materialized in VMEM).
_K_LAST = (((1,), (1,)), ((), ()))


def _decoder_kernel(xr_ref, xc_ref, w_ref, b_ref, attr_ref, adj_ref, *,
                    tn, col_resident):
    """One (i, j) tile of the problem.

    xr_ref   : (tm, edge_dim)        row block of agg_feature (f32)
    xc_ref   : (tn, edge_dim) or (N_pad, edge_dim) column operand (f32)
    w_ref    : (orig_dim, edge_dim)  attr_decoder.weight (PyTorch layout)
    b_ref    : (1, orig_dim)         attr_decoder.bias
    attr_ref : (tm, orig_dim)        relu(x_rows @ W.T + b)   (written at j==0)
    adj_ref  : (tm, tn)              sigmoid(x_rows @ x_cols.T), bf16
    """
    xr = xr_ref[...]

    if col_resident:
        # Full X stays VMEM-resident (constant block index); slice the column
        # tile in-kernel -> no per-step column re-DMA.
        j = pl.program_id(1)
        start = pl.multiple_of(j * tn, tn)
        xc = xc_ref[pl.ds(start, tn), :]
    else:
        xc = xc_ref[...]

    # Adjacency tile: bf16 operands on the MXU, f32 accumulation.
    adj = lax.dot_general(xr.astype(jnp.bfloat16), xc.astype(jnp.bfloat16),
                          _K_LAST, preferred_element_type=jnp.float32)
    # sigmoid(x) = 0.5 * tanh(0.5 * x) + 0.5  (one EUP transcendental/elem).
    adj_ref[...] = (0.5 * jnp.tanh(0.5 * adj) + 0.5).astype(adj_ref.dtype)

    # Attribute tile: Linear + ReLU in f32. The attr output block index is
    # constant along j, so it stays VMEM-resident across the column sweep;
    # compute it exactly once per row block.
    @pl.when(pl.program_id(1) == 0)
    def _():
        attr = lax.dot_general(xr, w_ref[...], _K_LAST,
                               preferred_element_type=jnp.float32)
        attr = attr + b_ref[...]
        attr_ref[...] = jnp.maximum(attr, 0.0).astype(attr_ref.dtype)


def _round_up(x, m):
    return ((x + m - 1) // m) * m


def _pick_tile_128(n_pad, cap):
    """Largest multiple of 128 that is <= cap and divides n_pad."""
    cap = max(128, (cap // 128) * 128)
    t = cap
    while t >= 128:
        if n_pad % t == 0:
            return t
        t -= 128
    return 128  # n_pad is always a multiple of 128


def _default_tile_cap():
    """1024 on 128-MiB-VMEM parts (v5e/v6e), 512 on v7x (64 MiB) / unknown."""
    try:
        info = pltpu.get_tpu_info()
        for attr in ("vmem_capacity_bytes", "vmem_bytes", "vmem_size_bytes"):
            v = getattr(info, attr, None)
            if v:
                return 1024 if int(v) >= (100 << 20) else 512
    except Exception:
        pass
    return 512


def decoder_forward(agg_feature, nb_id, weight, bias, *,
                    tile_cap=None,
                    adj_dtype=jnp.bfloat16,
                    attr_dtype=jnp.float32,
                    force_tiled_cols=False):
    """Pallas implementation of Decoder.forward (view_attn=False).

    nb_id is accepted but unused by the forward pass (matches PyTorch module).
    Returns (decode_attribute (N, orig_dim), decode_adj (N, N)).
    """
    del nb_id
    n, edge_dim = agg_feature.shape
    orig_dim = weight.shape[0]
    weight = weight.astype(jnp.float32)
    bias2d = bias.reshape(1, orig_dim).astype(jnp.float32)

    if tile_cap is None:
        tile_cap = _default_tile_cap()

    # Pad N up to a multiple of 128 so every tile (incl. the adj lane dim) is
    # a full multiple of 128 -> unmasked vst, no whole-(N,N) fallback block.
    n_pad = _round_up(max(n, 1), 128)
    x = agg_feature.astype(jnp.float32)
    if n_pad != n:
        x = jnp.pad(x, ((0, n_pad - n), (0, 0)))

    tm = _pick_tile_128(n_pad, tile_cap)
    tn = _pick_tile_128(n_pad, tile_cap)
    # v7x: the "parallel" row axis is sharded across 2 TensorCores; keep its
    # extent even so neither core sits idle (cheap no-op concern on v5e/v6e).
    if (n_pad // tm) % 2 == 1 and tm % 256 == 0:
        tm //= 2
    grid = (n_pad // tm, n_pad // tn)

    # Keep the full X resident as the column operand when it is small; the
    # tiled column path is the fallback for large N*edge_dim.
    col_resident = (not force_tiled_cols) and (n_pad * edge_dim * 4 <= (4 << 20))
    if col_resident:
        xc_spec = pl.BlockSpec((n_pad, edge_dim), lambda i, j: (0, 0))
        xc_rows = n_pad
    else:
        xc_spec = pl.BlockSpec((tn, edge_dim), lambda i, j: (j, 0))
        xc_rows = tn

    adj_itemsize = jnp.dtype(adj_dtype).itemsize
    attr_itemsize = jnp.dtype(attr_dtype).itemsize

    # Double-buffered working set (inputs + outputs). Clamp to 48 MiB so v7x's
    # 64 MiB physical VMEM keeps headroom for Mosaic internal scratch.
    need = 2 * (tm * edge_dim * 4
                + xc_rows * edge_dim * 4
                + orig_dim * edge_dim * 4
                + orig_dim * 4
                + tm * orig_dim * attr_itemsize
                + tm * tn * adj_itemsize)
    vmem_limit = int(min(max(need + (8 << 20), 32 << 20), 48 << 20))

    cost = pl.CostEstimate(
        flops=2 * n_pad * n_pad * edge_dim + 2 * n_pad * orig_dim * edge_dim,
        transcendentals=n_pad * n_pad,
        bytes_accessed=(n_pad * n_pad * adj_itemsize
                        + n_pad * orig_dim * attr_itemsize
                        + n_pad * edge_dim * 4
                        + (1 if col_resident else grid[0]) * n_pad * edge_dim * 4
                        + orig_dim * edge_dim * 4),
    )

    kernel = functools.partial(_decoder_kernel, tn=tn, col_resident=col_resident)

    attr, adj = pl.pallas_call(
        kernel,
        out_shape=(
            jax.ShapeDtypeStruct((n_pad, orig_dim), attr_dtype),
            jax.ShapeDtypeStruct((n_pad, n_pad), adj_dtype),
        ),
        grid=grid,
        in_specs=[
            pl.BlockSpec((tm, edge_dim), lambda i, j: (i, 0)),        # x row tile
            xc_spec,                                                  # x col operand
            pl.BlockSpec((orig_dim, edge_dim), lambda i, j: (0, 0)),  # weight
            pl.BlockSpec((1, orig_dim), lambda i, j: (0, 0)),         # bias
        ],
        out_specs=(
            pl.BlockSpec((tm, orig_dim), lambda i, j: (i, 0)),        # attr
            pl.BlockSpec((tm, tn), lambda i, j: (i, j)),              # adj
        ),
        compiler_params=pltpu.CompilerParams(
            dimension_semantics=("parallel", "arbitrary"),
            vmem_limit_bytes=vmem_limit,
        ),
        cost_estimate=cost,
    )(x, x, weight, bias2d)

    # Slice padding back off.
    return attr[:n], adj[:n, :n]


def init_decoder_params(key, orig_dim, edge_dim):
    """Deterministic init matching nn.Linear defaults: U(-1/sqrt(in), 1/sqrt(in))."""
    kw, kb = jax.random.split(key)
    stdv = 1.0 / math.sqrt(edge_dim)
    weight = jax.random.uniform(
        kw, (orig_dim, edge_dim), jnp.float32, minval=-stdv, maxval=stdv)
    bias = jax.random.uniform(
        kb, (orig_dim,), jnp.float32, minval=-stdv, maxval=stdv)
    return weight, bias


def _run_case(key, n, edge_dim, orig_dim, edge_channel, tile_cap,
              force_tiled_cols=False):
    k_x, k_nb, k_p = jax.random.split(key, 3)
    agg_feature = jax.random.normal(k_x, (n, edge_dim), jnp.float32)
    # neighbor ids in [-1, N); -1 marks "no neighbor" (unused in this forward)
    nb_id = jax.random.randint(k_nb, (n, edge_channel), -1, n, dtype=jnp.int32)
    weight, bias = init_decoder_params(k_p, orig_dim, edge_dim)

    decode_attribute, decode_adj = decoder_forward(
        agg_feature, nb_id, weight, bias,
        tile_cap=tile_cap, force_tiled_cols=force_tiled_cols)
    jax.block_until_ready((decode_attribute, decode_adj))

    assert decode_attribute.shape == (n, orig_dim)
    assert decode_adj.shape == (n, n)

    # Pure-JAX reference checks.
    ref_attr = jnp.maximum(agg_feature @ weight.T + bias, 0.0)
    x16 = agg_feature.astype(jnp.bfloat16)
    ref_adj = jax.nn.sigmoid(
        jnp.dot(x16, x16.T, preferred_element_type=jnp.float32))

    assert jnp.allclose(decode_attribute, ref_attr, atol=1e-5), "attr mismatch"
    # adj is computed with bf16 operands and stored as bf16 -> relaxed tol.
    assert jnp.allclose(decode_adj.astype(jnp.float32), ref_adj,
                        atol=2e-2), "adj mismatch"


if __name__ == "__main__":
    key = jax.random.PRNGKey(0)
    k0, k1, k2 = jax.random.split(key, 3)

    # Case 1: module-scale toy shapes (N=8 padded to 128), single-tile grid,
    # resident column operand, auto tile_cap / VMEM detection.
    _run_case(k0, n=8, edge_dim=32, orig_dim=16, edge_channel=4, tile_cap=None)

    # Case 2: forces a 2x2 grid and the tiled column-DMA fallback path.
    _run_case(k1, n=256, edge_dim=128, orig_dim=64, edge_channel=4,
              tile_cap=128, force_tiled_cols=True)

    # Case 3: irregular N (200 -> padded to 256), 2x2 grid, resident column
    # operand sliced in-kernel with pl.ds.
    _run_case(k2, n=200, edge_dim=64, orig_dim=32, edge_channel=4,
              tile_cap=128)

    print("KERNEL_OK")
</pallas_src>

<mosaic_0001>
module attributes {stable_mosaic.version = 11 : i64} {
  func.func @_decoder_kernel(%arg0: i32, %arg1: i32, %arg2: memref<128x32xf32, #tpu.memory_space<vmem>>, %arg3: memref<128x32xf32, #tpu.memory_space<vmem>>, %arg4: memref<16x32xf32, #tpu.memory_space<vmem>>, %arg5: memref<1x16xf32, #tpu.memory_space<vmem>>, %arg6: memref<128x16xf32, #tpu.memory_space<vmem>>, %arg7: memref<128x128xbf16, #tpu.memory_space<vmem>>) attributes {dimension_semantics = [#tpu.dimension_semantics<parallel>, #tpu.dimension_semantics<arbitrary>], iteration_bounds = array<i64: 1, 1>, scalar_prefetch = 0 : i64, scratch_operands = 0 : i64, tpu.core_type = #tpu.core_type<tc>, window_params = [{transform_indices = @transform_0, window_bounds = array<i64: 128, 32>}, {pipeline_mode = #tpu.pipeline_mode<synchronous>, transform_indices = @transform_1, window_bounds = array<i64: 128, 32>}, {pipeline_mode = #tpu.pipeline_mode<synchronous>, transform_indices = @transform_2, window_bounds = array<i64: 16, 32>}, {pipeline_mode = #tpu.pipeline_mode<synchronous>, transform_indices = @transform_3, window_bounds = array<i64: 1, 16>}, {transform_indices = @transform_4, window_bounds = array<i64: 128, 16>}, {transform_indices = @transform_5, window_bounds = array<i64: 128, 128>}]} {
    %c0 = arith.constant 0 : index
    %c0_0 = arith.constant 0 : index
    %0 = vector.load %arg2[%c0, %c0_0] : memref<128x32xf32, #tpu.memory_space<vmem>>, vector<128x32xf32>
    %c128_i32 = arith.constant 128 : i32
    %1 = arith.muli %arg1, %c128_i32 : i32
    %2 = tpu.assume_multiple %1, 128 : i32
    %3 = arith.index_cast %2 : i32 to index
    %c0_1 = arith.constant 0 : index
    %4 = vector.load %arg3[%3, %c0_1] : memref<128x32xf32, #tpu.memory_space<vmem>>, vector<128x32xf32>
    %5 = arith.truncf %0 : vector<128x32xf32> to vector<128x32xbf16>
    %6 = arith.truncf %4 : vector<128x32xf32> to vector<128x32xbf16>
    %cst = arith.constant dense<0.000000e+00> : vector<128x128xf32>
    %7 = tpu.matmul %5, %6, %cst {dimension_numbers = #tpu.dot_dimension_numbers<[1], [1], [0], [0], [0, 0, 1, 0], [], []>} : vector<128x32xbf16>, vector<128x32xbf16>, vector<128x128xf32> -> vector<128x128xf32>
    %cst_2 = arith.constant 5.000000e-01 : f32
    %8 = vector.broadcast %cst_2 : f32 to vector<128x128xf32>
    %9 = arith.mulf %8, %7 : vector<128x128xf32>
    %10 = math.tanh %9 : vector<128x128xf32>
    %cst_3 = arith.constant 5.000000e-01 : f32
    %11 = vector.broadcast %cst_3 : f32 to vector<128x128xf32>
    %12 = arith.mulf %11, %10 : vector<128x128xf32>
    %cst_4 = arith.constant 5.000000e-01 : f32
    %13 = vector.broadcast %cst_4 : f32 to vector<128x128xf32>
    %14 = arith.addf %12, %13 : vector<128x128xf32>
    %15 = arith.truncf %14 : vector<128x128xf32> to vector<128x128xbf16>
    %c0_5 = arith.constant 0 : index
    %c0_6 = arith.constant 0 : index
    %16 = vector.load %arg7[%c0_5, %c0_6] : memref<128x128xbf16, #tpu.memory_space<vmem>>, vector<128x128xbf16>
    tpu.vector_store %arg7[%c0_5, %c0_6], %15 {strides = array<i32>} : memref<128x128xbf16, #tpu.memory_space<vmem>>, vector<128x128xbf16>,
    %c0_i32 = arith.constant 0 : i32
    %17 = arith.cmpi eq, %arg1, %c0_i32 : i32
    %18 = arith.extui %17 : i1 to i32
    %c0_i32_7 = arith.constant 0 : i32
    %19 = arith.cmpi ne, %18, %c0_i32_7 : i32
    scf.if %19 {
      %c0_8 = arith.constant 0 : index
      %c0_9 = arith.constant 0 : index
      %20 = vector.load %arg4[%c0_8, %c0_9] : memref<16x32xf32, #tpu.memory_space<vmem>>, vector<16x32xf32>
      %cst_10 = arith.constant dense<0.000000e+00> : vector<128x16xf32>
      %21 = tpu.matmul %0, %20, %cst_10 {dimension_numbers = #tpu.dot_dimension_numbers<[1], [1], [0], [0], [0, 0, 1, 0], [], []>} : vector<128x32xf32>, vector<16x32xf32>, vector<128x16xf32> -> vector<128x16xf32>
      %c0_11 = arith.constant 0 : index
      %c0_12 = arith.constant 0 : index
      %22 = vector.load %arg5[%c0_11, %c0_12] : memref<1x16xf32, #tpu.memory_space<vmem>>, vector<1x16xf32>
      %23 = vector.broadcast %22 : vector<1x16xf32> to vector<128x16xf32>
      %24 = arith.addf %21, %23 : vector<128x16xf32>
      %cst_13 = arith.constant 0.000000e+00 : f32
      %25 = vector.broadcast %cst_13 : f32 to vector<128x16xf32>
      %26 = arith.maximumf %24, %25 : vector<128x16xf32>
      %c0_14 = arith.constant 0 : index
      %c0_15 = arith.constant 0 : index
      %27 = vector.load %arg6[%c0_14, %c0_15] : memref<128x16xf32, #tpu.memory_space<vmem>>, vector<128x16xf32>
      tpu.vector_store %arg6[%c0_14, %c0_15], %26 {strides = array<i32>} : memref<128x16xf32, #tpu.memory_space<vmem>>, vector<128x16xf32>,
    } else {
    }
    return
  }
  func.func @transform_0(%arg0: i32, %arg1: i32) -> (i32, i32) {
    %c0_i32 = arith.constant 0 : i32
    %c0_i32_0 = arith.constant 0 : i32
    return %arg0, %c0_i32 : i32, i32
  }
  func.func @transform_1(%arg0: i32, %arg1: i32) -> (i32, i32) {
    %c0_i32 = arith.constant 0 : i32
    %c0_i32_0 = arith.constant 0 : i32
    %c0_i32_1 = arith.constant 0 : i32
    return %c0_i32, %c0_i32_0 : i32, i32
  }
  func.func @transform_2(%arg0: i32, %arg1: i32) -> (i32, i32) {
    %c0_i32 = arith.constant 0 : i32
    %c0_i32_0 = arith.constant 0 : i32
    %c0_i32_1 = arith.constant 0 : i32
    return %c0_i32, %c0_i32_0 : i32, i32
  }
  func.func @transform_3(%arg0: i32, %arg1: i32) -> (i32, i32) {
    %c0_i32 = arith.constant 0 : i32
    %c0_i32_0 = arith.constant 0 : i32
    %c0_i32_1 = arith.constant 0 : i32
    return %c0_i32, %c0_i32_0 : i32, i32
  }
  func.func @transform_4(%arg0: i32, %arg1: i32) -> (i32, i32) {
    %c0_i32 = arith.constant 0 : i32
    %c0_i32_0 = arith.constant 0 : i32
    return %arg0, %c0_i32 : i32, i32
  }
  func.func @transform_5(%arg0: i32, %arg1: i32) -> (i32, i32) {
    %c0_i32 = arith.constant 0 : i32
    return %arg0, %arg1 : i32, i32
  }
}

</mosaic_0001>

<llo_original>
// kernel: tpu_custom_call.1
$region0: #{tpu_custom_call.1}
  #allocation0 [shape = 'u32[]', space=smem, size = 0x4, offset = 0x4, fixed_abs, tag = 'smem constant byte address 0x4 - core index']
  #allocation1 [shape = 'u32[144,128]{1,0:T(1,128)}', space=vmem, size = 0x12000, scoped, tag = 'internal scratch']
  %s0 = inlined_call_operand.vmem [shape: f32[128,32], index: 0, kind: input, shape index: {}]
  %s1 = inlined_call_operand.vmem [shape: f32[128,32], index: 1, kind: input, shape index: {}]
  %s2 = inlined_call_operand.vmem [shape: f32[16,32], index: 2, kind: input, shape index: {}]
  %s3 = inlined_call_operand.vmem [shape: f32[1,16], index: 3, kind: input, shape index: {}]
  %s4 = inlined_call_operand.vmem [shape: f32[128,16], index: 4, kind: output, shape index: {0}]
  %s5 = inlined_call_operand.hbm [shape: bf16[128,128], index: 5, kind: output, shape index: {1}]
  %6 = xla_tuple %s4, %s5
  %s7 = sld [smem:[#allocation0]]
  $region38: #{tpu_custom_call.1} parent=0
    _
  %s9 = ssub.s32 1, %s7
  %s10 = scalar_select 0, %s9, %s7
  $region1: #{tpu_custom_call.1} parent=0
    #allocation2 [shape = 'u8[32768]{0}', space=vmem, size = 0x8000, scoped, tag = 'output window, operand 1, single buffered']
    #allocation3 [shape = 's32[1]{0}', space=sflag, size = 0x4, scoped, tag = 'scoped memory for tpu_custom_call.1']
    %11 = vsyncpa [#allocation3], 0
    // Predicated region
    $region2: #{tpu_custom_call.1} parent=1 // pred_check
      _
    $region3: #{tpu_custom_call.1} parent=1 // pred_check_branch
      %13 = sbr.rel (0) target = $region5
    $region4: #{tpu_custom_call.1} parent=1 // pred_region
      _
    $region5: #{tpu_custom_call.1} parent=1 // pred_fallthru
      _
    // Predicated region
    $region6: #{tpu_custom_call.1} parent=1 // pred_check
      _
    $region7: #{tpu_custom_call.1} parent=1 // pred_check_branch
      %15 = sbr.rel (0) target = $region9
    $region8: #{tpu_custom_call.1} parent=1 // pred_region
      _
    $region9: #{tpu_custom_call.1} parent=1 // pred_fallthru
      _
    // Predicated region
    $region10: #{tpu_custom_call.1} parent=1 // pred_check
      _
    $region11: #{tpu_custom_call.1} parent=1 // pred_check_branch
      %17 = sbr.rel (0) target = $region13
    $region12: #{tpu_custom_call.1} parent=1 // pred_region
      _
    $region13: #{tpu_custom_call.1} parent=1 // pred_fallthru
      _
    // Predicated region
    $region14: #{tpu_custom_call.1} parent=1 // pred_check
      _
    $region15: #{tpu_custom_call.1} parent=1 // pred_check_branch
      %19 = sbr.rel (0) target = $region17
    $region16: #{tpu_custom_call.1} parent=1 // pred_region
      _
    $region17: #{tpu_custom_call.1} parent=1 // pred_fallthru
      _
    %v21 = vld [vmem:[%s0] sm:$0xff]
    %v22 = vld [vmem:[%s0 + $0x8] sm:$0xff]
    %v23 = vld [vmem:[%s0 + $0x10] sm:$0xff]
    %v24 = vld [vmem:[%s0 + $0x18] sm:$0xff]
    %v25 = vld [vmem:[%s0 + $0x20] sm:$0xff]
    %v26 = vld [vmem:[%s0 + $0x28] sm:$0xff]
    %v27 = vld [vmem:[%s0 + $0x30] sm:$0xff]
    %v28 = vld [vmem:[%s0 + $0x38] sm:$0xff]
    %v29 = vld [vmem:[%s0 + $0x40] sm:$0xff]
    %v30 = vld [vmem:[%s0 + $0x48] sm:$0xff]
    %v31 = vld [vmem:[%s0 + $0x50] sm:$0xff]
    %v32 = vld [vmem:[%s0 + $0x58] sm:$0xff]
    %v33 = vld [vmem:[%s0 + $0x60] sm:$0xff]
    %v34 = vld [vmem:[%s0 + $0x68] sm:$0xff]
    %v35 = vld [vmem:[%s0 + $0x70] sm:$0xff]
    %v36 = vld [vmem:[%s0 + $0x78] sm:$0xff]
    %s37 = smul.u32 0, 128
    %s38 = scalar_lea.vmem %s1, %s37
    %v39 = vld [vmem:[%s38] sm:$0xff]
    %v40 = vld [vmem:[%s38 + $0x8] sm:$0xff]
    %v41 = vld [vmem:[%s38 + $0x10] sm:$0xff]
    %v42 = vld [vmem:[%s38 + $0x18] sm:$0xff]
    %v43 = vld [vmem:[%s38 + $0x20] sm:$0xff]
    %v44 = vld [vmem:[%s38 + $0x28] sm:$0xff]
    %v45 = vld [vmem:[%s38 + $0x30] sm:$0xff]
    %v46 = vld [vmem:[%s38 + $0x38] sm:$0xff]
    %v47 = vld [vmem:[%s38 + $0x40] sm:$0xff]
    %v48 = vld [vmem:[%s38 + $0x48] sm:$0xff]
    %v49 = vld [vmem:[%s38 + $0x50] sm:$0xff]
    %v50 = vld [vmem:[%s38 + $0x58] sm:$0xff]
    %v51 = vld [vmem:[%s38 + $0x60] sm:$0xff]
    %v52 = vld [vmem:[%s38 + $0x68] sm:$0xff]
    %v53 = vld [vmem:[%s38 + $0x70] sm:$0xff]
    %v54 = vld [vmem:[%s38 + $0x78] sm:$0xff]
    %v55 = vpack.c.bf16 %v22, %v21
    %v56 = vpack.c.bf16 %v24, %v23
    %v57 = vpack.c.bf16 %v26, %v25
    %v58 = vpack.c.bf16 %v28, %v27
    %v59 = vpack.c.bf16 %v30, %v29
    %v60 = vpack.c.bf16 %v32, %v31
    %v61 = vpack.c.bf16 %v34, %v33
    %v62 = vpack.c.bf16 %v36, %v35
    %v63 = vpack.c.bf16 %v40, %v39
    %v64 = vpack.c.bf16 %v42, %v41
    %v65 = vpack.c.bf16 %v44, %v43
    %v66 = vpack.c.bf16 %v46, %v45
    %v67 = vpack.c.bf16 %v48, %v47
    %v68 = vpack.c.bf16 %v50, %v49
    %v69 = vpack.c.bf16 %v52, %v51
    %v70 = vpack.c.bf16 %v54, %v53
    %vm71 = vcmask 261120
    %v73 = vsel %vm71, %v55, 0
    %v76 = vsel %vm71, %v56, 0
    %v79 = vsel %vm71, %v57, 0
    %v82 = vsel %vm71, %v58, 0
    %v85 = vsel %vm71, %v59, 0
    %v88 = vsel %vm71, %v60, 0
    %v91 = vsel %vm71, %v61, 0
    %v94 = vsel %vm71, %v62, 0
    %v97 = vsel %vm71, %v63, 0
    %v100 = vsel %vm71, %v64, 0
    %v103 = vsel %vm71, %v65, 0
    %v106 = vsel %vm71, %v66, 0
    %v109 = vsel %vm71, %v67, 0
    %v112 = vsel %vm71, %v68, 0
    %v115 = vsel %vm71, %v69, 0
    %v118 = vsel %vm71, %v70, 0
    %120 = vmatprep.subr.bf16.mxu0 0
    %121 = vmatpush1.bf16.xpose.msra.mxu0 %v97
    %122 = vmatprep.subr.bf16.mxu0 0
    %123 = vmatpush1.bf16.xpose.msra.mxu0 %v100
    %124 = vmatprep.subr.bf16.mxu0 0
    %125 = vmatpush1.bf16.xpose.msra.mxu0 %v103
    %126 = vmatprep.subr.bf16.mxu0 0
    %127 = vmatpush1.bf16.xpose.msra.mxu0 %v106
    %128 = vmatprep.subr.bf16.mxu0 0
    %129 = vmatpush1.bf16.xpose.msra.mxu0 %v109
    %130 = vmatprep.subr.bf16.mxu0 0
    %131 = vmatpush1.bf16.xpose.msra.mxu0 %v112
    %132 = vmatprep.subr.bf16.mxu0 0
    %133 = vmatpush1.bf16.xpose.msra.mxu0 %v115
    %134 = vmatprep.subr.bf16.mxu0 0
    %135 = vmatpush1.bf16.xpose.msra.mxu0 %v118
    %136 = vmatprep.subr.bf16.mxu0 0
    %137 = vmatpush1.bf16.xpose.msra.mxu0 0
    %138 = vmatprep.subr.bf16.mxu0 0
    %139 = vmatpush1.bf16.xpose.msra.mxu0 0
    %140 = vmatprep.subr.bf16.mxu0 0
    %141 = vmatpush1.bf16.xpose.msra.mxu0 0
    %142 = vmatprep.subr.bf16.mxu0 0
    %143 = vmatpush1.bf16.xpose.msra.mxu0 0
    %144 = vmatprep.subr.bf16.mxu0 0
    %145 = vmatpush1.bf16.xpose.msra.mxu0 0
    %146 = vmatprep.subr.bf16.mxu0 0
    %147 = vmatpush1.bf16.xpose.msra.mxu0 0
    %148 = vmatprep.subr.bf16.mxu0 0
    %149 = vmatpush1.bf16.xpose.msra.mxu0 0
    %150 = vmatprep.subr.bf16.mxu0 0
    %151 = vmatpush1.bf16.xpose.msra.mxu0 0
    %152 = vmatprep.mubr.bf16.mxu0 0
    %153 = vmatmul.mubr.bf16.gmra.mrb[0].mxu0 %v73
    %v154 = vpop.f32.mrb[0].mxu0
    %v155 = vadd.f32 0.0, %v154
    %v156 = vpop.f32.mrb[0].mxu0
    %v157 = vpop.f32.mrb[0].mxu0
    %v158 = vadd.f32 0.0, %v157
    %v159 = vpop.f32.mrb[0].mxu0
    %160 = vmatprep.mubr.bf16.mxu0 0
    %161 = vmatmul.mubr.bf16.gmra.mrb[0].mxu0 %v76
    %v162 = vpop.f32.mrb[0].mxu0
    %v163 = vadd.f32 0.0, %v162
    %v164 = vpop.f32.mrb[0].mxu0
    %v165 = vpop.f32.mrb[0].mxu0
    %v166 = vadd.f32 0.0, %v165
    %v167 = vpop.f32.mrb[0].mxu0
    %168 = vmatprep.mubr.bf16.mxu0 0
    %169 = vmatmul.mubr.bf16.gmra.mrb[0].mxu0 %v79
    %v170 = vpop.f32.mrb[0].mxu0
    %v171 = vadd.f32 0.0, %v170
    %v172 = vpop.f32.mrb[0].mxu0
    %v173 = vpop.f32.mrb[0].mxu0
    %v174 = vadd.f32 0.0, %v173
    %v175 = vpop.f32.mrb[0].mxu0
    %176 = vmatprep.mubr.bf16.mxu0 0
    %177 = vmatmul.mubr.bf16.gmra.mrb[0].mxu0 %v82
    %v178 = vpop.f32.mrb[0].mxu0
    %v179 = vadd.f32 0.0, %v178
    %v180 = vpop.f32.mrb[0].mxu0
    %v181 = vpop.f32.mrb[0].mxu0
    %v182 = vadd.f32 0.0, %v181
    %v183 = vpop.f32.mrb[0].mxu0
    %184 = vmatprep.mubr.bf16.mxu0 0
    %185 = vmatmul.mubr.bf16.gmra.mrb[0].mxu0 %v85
    %v186 = vpop.f32.mrb[0].mxu0
    %v187 = vadd.f32 0.0, %v186
    %v188 = vpop.f32.mrb[0].mxu0
    %v189 = vpop.f32.mrb[0].mxu0
    %v190 = vadd.f32 0.0, %v189
    %v191 = vpop.f32.mrb[0].mxu0
    %192 = vmatprep.mubr.bf16.mxu0 0
    %193 = vmatmul.mubr.bf16.gmra.mrb[0].mxu0 %v88
    %v194 = vpop.f32.mrb[0].mxu0
    %v195 = vadd.f32 0.0, %v194
    %v196 = vpop.f32.mrb[0].mxu0
    %v197 = vpop.f32.mrb[0].mxu0
    %v198 = vadd.f32 0.0, %v197
    %v199 = vpop.f32.mrb[0].mxu0
    %200 = vmatprep.mubr.bf16.mxu0 0
    %201 = vmatmul.mubr.bf16.gmra.mrb[0].mxu0 %v91
    %v202 = vpop.f32.mrb[0].mxu0
    %v203 = vadd.f32 0.0, %v202
    %v204 = vpop.f32.mrb[0].mxu0
    %v205 = vpop.f32.mrb[0].mxu0
    %v206 = vadd.f32 0.0, %v205
    %v207 = vpop.f32.mrb[0].mxu0
    %208 = vmatprep.mubr.bf16.mxu0 0
    %209 = vmatmul.mubr.bf16.gmra.mrb[0].mxu0 %v94
    %v210 = vpop.f32.mrb[0].mxu0
    %v211 = vadd.f32 0.0, %v210
    %v212 = vpop.f32.mrb[0].mxu0
    %v213 = vpop.f32.mrb[0].mxu0
    %v214 = vadd.f32 0.0, %v213
    %v215 = vpop.f32.mrb[0].mxu0
    %216 = vdwg.mxu0
    %v217 = vmul.f32 %v155, 0.5
    %v218 = vmul.f32 %v158, 0.5
    %v219 = vmul.f32 %v163, 0.5
    %v220 = vmul.f32 %v166, 0.5
    %v221 = vmul.f32 %v171, 0.5
    %v222 = vmul.f32 %v174, 0.5
    %v223 = vmul.f32 %v179, 0.5
    %v224 = vmul.f32 %v182, 0.5
    %v225 = vmul.f32 %v187, 0.5
    %v226 = vmul.f32 %v190, 0.5
    %v227 = vmul.f32 %v195, 0.5
    %v228 = vmul.f32 %v198, 0.5
    %v229 = vmul.f32 %v203, 0.5
    %v230 = vmul.f32 %v206, 0.5
    %v231 = vmul.f32 %v211, 0.5
    %v232 = vmul.f32 %v214, 0.5
    %v233 = vtanh.pop %v217
    %v234 = vtanh.pop %v218
    %v235 = vtanh.pop %v219
    %v236 = vtanh.pop %v220
    %v237 = vtanh.pop %v221
    %v238 = vtanh.pop %v222
    %v239 = vtanh.pop %v223
    %v240 = vtanh.pop %v224
    %v241 = vtanh.pop %v225
    %v242 = vtanh.pop %v226
    %v243 = vtanh.pop %v227
    %v244 = vtanh.pop %v228
    %v245 = vtanh.pop %v229
    %v246 = vtanh.pop %v230
    %v247 = vtanh.pop %v231
    %v248 = vtanh.pop %v232
    %v249 = vmul.f32 %v233, 0.5
    %v250 = vmul.f32 %v234, 0.5
    %v251 = vmul.f32 %v235, 0.5
    %v252 = vmul.f32 %v236, 0.5
    %v253 = vmul.f32 %v237, 0.5
    %v254 = vmul.f32 %v238, 0.5
    %v255 = vmul.f32 %v239, 0.5
    %v256 = vmul.f32 %v240, 0.5
    %v257 = vmul.f32 %v241, 0.5
    %v258 = vmul.f32 %v242, 0.5
    %v259 = vmul.f32 %v243, 0.5
    %v260 = vmul.f32 %v244, 0.5
    %v261 = vmul.f32 %v245, 0.5
    %v262 = vmul.f32 %v246, 0.5
    %v263 = vmul.f32 %v247, 0.5
    %v264 = vmul.f32 %v248, 0.5
    %v265 = vadd.f32 %v249, 0.5
    %v266 = vadd.f32 %v250, 0.5
    %v267 = vadd.f32 %v251, 0.5
    %v268 = vadd.f32 %v252, 0.5
    %v269 = vadd.f32 %v253, 0.5
    %v270 = vadd.f32 %v254, 0.5
    %v271 = vadd.f32 %v255, 0.5
    %v272 = vadd.f32 %v256, 0.5
    %v273 = vadd.f32 %v257, 0.5
    %v274 = vadd.f32 %v258, 0.5
    %v275 = vadd.f32 %v259, 0.5
    %v276 = vadd.f32 %v260, 0.5
    %v277 = vadd.f32 %v261, 0.5
    %v278 = vadd.f32 %v262, 0.5
    %v279 = vadd.f32 %v263, 0.5
    %v280 = vadd.f32 %v264, 0.5
    %v281 = vpack.c.bf16 %v266, %v265
    %v282 = vpack.c.bf16 %v268, %v267
    %v283 = vpack.c.bf16 %v270, %v269
    %v284 = vpack.c.bf16 %v272, %v271
    %v285 = vpack.c.bf16 %v274, %v273
    %v286 = vpack.c.bf16 %v276, %v275
    %v287 = vpack.c.bf16 %v278, %v277
    %v288 = vpack.c.bf16 %v280, %v279
    %v297 = vunpack.c.l.b16 %v281
    %v298 = vunpack.c.h.b16 %v281
    %v299 = vunpack.c.l.b16 %v282
    %v300 = vunpack.c.h.b16 %v282
    %v301 = vunpack.c.l.b16 %v283
    %v302 = vunpack.c.h.b16 %v283
    %v303 = vunpack.c.l.b16 %v284
    %v304 = vunpack.c.h.b16 %v284
    %v305 = vunpack.c.l.b16 %v285
    %v306 = vunpack.c.h.b16 %v285
    %v307 = vunpack.c.l.b16 %v286
    %v308 = vunpack.c.h.b16 %v286
    %v309 = vunpack.c.l.b16 %v287
    %v310 = vunpack.c.h.b16 %v287
    %v311 = vunpack.c.l.b16 %v288
    %v312 = vunpack.c.h.b16 %v288
    %v313 = vpack.c.b16 %v297, %v297
    %v314 = vpack.c.b16 %v298, %v298
    %v315 = vpack.c.b16 %v299, %v299
    %v316 = vpack.c.b16 %v300, %v300
    %v317 = vpack.c.b16 %v301, %v301
    %v318 = vpack.c.b16 %v302, %v302
    %v319 = vpack.c.b16 %v303, %v303
    %v320 = vpack.c.b16 %v304, %v304
    %v321 = vpack.c.b16 %v305, %v305
    %v322 = vpack.c.b16 %v306, %v306
    %v323 = vpack.c.b16 %v307, %v307
    %v324 = vpack.c.b16 %v308, %v308
    %v325 = vpack.c.b16 %v309, %v309
    %v326 = vpack.c.b16 %v310, %v310
    %v327 = vpack.c.b16 %v311, %v311
    %v328 = vpack.c.b16 %v312, %v312
    %345 = vst [vmem:[#allocation2] sm:$0xf] %v313
    %346 = vst [vmem:[#allocation2 + $0x4] sm:$0xf] %v314
    %347 = vst [vmem:[#allocation2 + $0x8] sm:$0xf] %v315
    %348 = vst [vmem:[#allocation2 + $0xc] sm:$0xf] %v316
    %349 = vst [vmem:[#allocation2 + $0x10] sm:$0xf] %v317
    %350 = vst [vmem:[#allocation2 + $0x14] sm:$0xf] %v318
    %351 = vst [vmem:[#allocation2 + $0x18] sm:$0xf] %v319
    %352 = vst [vmem:[#allocation2 + $0x1c] sm:$0xf] %v320
    %353 = vst [vmem:[#allocation2 + $0x20] sm:$0xf] %v321
    %354 = vst [vmem:[#allocation2 + $0x24] sm:$0xf] %v322
    %355 = vst [vmem:[#allocation2 + $0x28] sm:$0xf] %v323
    %356 = vst [vmem:[#allocation2 + $0x2c] sm:$0xf] %v324
    %357 = vst [vmem:[#allocation2 + $0x30] sm:$0xf] %v325
    %358 = vst [vmem:[#allocation2 + $0x34] sm:$0xf] %v326
    %359 = vst [vmem:[#allocation2 + $0x38] sm:$0xf] %v327
    %360 = vst [vmem:[#allocation2 + $0x3c] sm:$0xf] %v328
    %p361 = scmp.eq.s32.totalorder 0, 0
    // Predicated region
    $region18: #{tpu_custom_call.1} parent=1 // pred_check
      %p362 = pneg %p361
    $region19: #{tpu_custom_call.1} parent=1 // pred_check_branch
      %364 = sbr.rel (%p362) target = $region21
    $region20: #{tpu_custom_call.1} parent=1 // pred_region
      %v365 = vld [vmem:[%s2] sm:$0xff]
      %v366 = vld [vmem:[%s2 + $0x8] sm:$0xff]
      %v367 = vld [vmem:[%s3] sm:$0x1]
      %v369 = vlaneseq
      %v370 = vshrl.u32 %v369, 7
      %v371 = vsub.s32 0, %v370
      %v372 = vrot.slane %v367, %v371
      %v375 = vsel %vm71, %v21, 0
      %v378 = vsel %vm71, %v22, 0
      %v381 = vsel %vm71, %v23, 0
      %v384 = vsel %vm71, %v24, 0
      %v387 = vsel %vm71, %v25, 0
      %v390 = vsel %vm71, %v26, 0
      %v393 = vsel %vm71, %v27, 0
      %v396 = vsel %vm71, %v28, 0
      %v399 = vsel %vm71, %v29, 0
      %v402 = vsel %vm71, %v30, 0
      %v405 = vsel %vm71, %v31, 0
      %v408 = vsel %vm71, %v32, 0
      %v411 = vsel %vm71, %v33, 0
      %v414 = vsel %vm71, %v34, 0
      %v417 = vsel %vm71, %v35, 0
      %v420 = vsel %vm71, %v36, 0
      %v423 = vsel %vm71, %v365, 0
      %v426 = vsel %vm71, %v366, 0
      %428 = vmatprep.subr.mxu0 0.0
      %429 = vmatpush1.xpose.msra.mxu0 %v423
      %430 = vmatprep.subr.mxu0 0.0
      %431 = vmatpush1.xpose.msra.mxu0 %v426
      %432 = vmatprep.subr.mxu0 0.0
      %433 = vmatpush1.xpose.msra.mxu0 0.0
      %434 = vmatprep.subr.mxu0 0.0
      %435 = vmatpush1.xpose.msra.mxu0 0.0
      %436 = vmatprep.subr.mxu0 0.0
      %437 = vmatpush1.xpose.msra.mxu0 0.0
      %438 = vmatprep.subr.mxu0 0.0
      %439 = vmatpush1.xpose.msra.mxu0 0.0
      %440 = vmatprep.subr.mxu0 0.0
      %441 = vmatpush1.xpose.msra.mxu0 0.0
      %442 = vmatprep.subr.mxu0 0.0
      %443 = vmatpush1.xpose.msra.mxu0 0.0
      %444 = vmatprep.subr.mxu0 0.0
      %445 = vmatpush1.xpose.msra.mxu0 0.0
      %446 = vmatprep.subr.mxu0 0.0
      %447 = vmatpush1.xpose.msra.mxu0 0.0
      %448 = vmatprep.subr.mxu0 0.0
      %449 = vmatpush1.xpose.msra.mxu0 0.0
      %450 = vmatprep.subr.mxu0 0.0
      %451 = vmatpush1.xpose.msra.mxu0 0.0
      %452 = vmatprep.subr.mxu0 0.0
      %453 = vmatpush1.xpose.msra.mxu0 0.0
      %454 = vmatprep.subr.mxu0 0.0
      %455 = vmatpush1.xpose.msra.mxu0 0.0
      %456 = vmatprep.subr.mxu0 0.0
      %457 = vmatpush1.xpose.msra.mxu0 0.0
      %458 = vmatprep.subr.mxu0 0.0
      %459 = vmatpush1.xpose.msra.mxu0 0.0
      %460 = vmatprep.subr.mxu0 0.0
      %461 = vmatpush1.xpose.msra.mxu0 0.0
      %462 = vmatprep.subr.mxu0 0.0
      %463 = vmatpush1.xpose.msra.mxu0 0.0
      %464 = vmatprep.subr.mxu0 0.0
      %465 = vmatpush1.xpose.msra.mxu0 0.0
      %466 = vmatprep.subr.mxu0 0.0
      %467 = vmatpush1.xpose.msra.mxu0 0.0
      %468 = vmatprep.subr.mxu0 0.0
      %469 = vmatpush1.xpose.msra.mxu0 0.0
      %470 = vmatprep.subr.mxu0 0.0
      %471 = vmatpush1.xpose.msra.mxu0 0.0
      %472 = vmatprep.subr.mxu0 0.0
      %473 = vmatpush1.xpose.msra.mxu0 0.0
      %474 = vmatprep.subr.mxu0 0.0
      %475 = vmatpush1.xpose.msra.mxu0 0.0
      %476 = vmatprep.subr.mxu0 0.0
      %477 = vmatpush1.xpose.msra.mxu0 0.0
      %478 = vmatprep.subr.mxu0 0.0
      %479 = vmatpush1.xpose.msra.mxu0 0.0
      %480 = vmatprep.subr.mxu0 0.0
      %481 = vmatpush1.xpose.msra.mxu0 0.0
      %482 = vmatprep.subr.mxu0 0.0
      %483 = vmatpush1.xpose.msra.mxu0 0.0
      %484 = vmatprep.subr.mxu0 0.0
      %485 = vmatpush1.xpose.msra.mxu0 0.0
      %486 = vmatprep.subr.mxu0 0.0
      %487 = vmatpush1.xpose.msra.mxu0 0.0
      %488 = vmatprep.subr.mxu0 0.0
      %489 = vmatpush1.xpose.msra.mxu0 0.0
      %490 = vmatprep.subr.mxu0 0.0
      %491 = vmatpush1.xpose.msra.mxu0 0.0
      %492 = vmatprep.mubr.f32.mxu0 0.0
      %493 = vmatmul.mubr.f32.gmra.mrb[0].mxu0 %v375
      %v494 = vpop.f32.mrb[0].mxu0
      %v495 = vadd.f32 %v372, %v494
      %v496 = vpop.f32.mrb[0].mxu0
      %497 = vmatprep.mubr.f32.mxu0 0.0
      %498 = vmatmul.mubr.f32.gmra.mrb[0].mxu0 %v378
      %v499 = vpop.f32.mrb[0].mxu0
      %v500 = vadd.f32 %v372, %v499
      %v501 = vpop.f32.mrb[0].mxu0
      %502 = vmatprep.mubr.f32.mxu0 0.0
      %503 = vmatmul.mubr.f32.gmra.mrb[0].mxu0 %v381
      %v504 = vpop.f32.mrb[0].mxu0
      %v505 = vadd.f32 %v372, %v504
      %v506 = vpop.f32.mrb[0].mxu0
      %507 = vmatprep.mubr.f32.mxu0 0.0
      %508 = vmatmul.mubr.f32.gmra.mrb[0].mxu0 %v384
      %v509 = vpop.f32.mrb[0].mxu0
      %v510 = vadd.f32 %v372, %v509
      %v511 = vpop.f32.mrb[0].mxu0
      %512 = vmatprep.mubr.f32.mxu0 0.0
      %513 = vmatmul.mubr.f32.gmra.mrb[0].mxu0 %v387
      %v514 = vpop.f32.mrb[0].mxu0
      %v515 = vadd.f32 %v372, %v514
      %v516 = vpop.f32.mrb[0].mxu0
      %517 = vmatprep.mubr.f32.mxu0 0.0
      %518 = vmatmul.mubr.f32.gmra.mrb[0].mxu0 %v390
      %v519 = vpop.f32.mrb[0].mxu0
      %v520 = vadd.f32 %v372, %v519
      %v521 = vpop.f32.mrb[0].mxu0
      %522 = vmatprep.mubr.f32.mxu0 0.0
      %523 = vmatmul.mubr.f32.gmra.mrb[0].mxu0 %v393
      %v524 = vpop.f32.mrb[0].mxu0
      %v525 = vadd.f32 %v372, %v524
      %v526 = vpop.f32.mrb[0].mxu0
      %527 = vmatprep.mubr.f32.mxu0 0.0
      %528 = vmatmul.mubr.f32.gmra.mrb[0].mxu0 %v396
      %v529 = vpop.f32.mrb[0].mxu0
      %v530 = vadd.f32 %v372, %v529
      %v531 = vpop.f32.mrb[0].mxu0
      %532 = vmatprep.mubr.f32.mxu0 0.0
      %533 = vmatmul.mubr.f32.gmra.mrb[0].mxu0 %v399
      %v534 = vpop.f32.mrb[0].mxu0
      %v535 = vadd.f32 %v372, %v534
      %v536 = vpop.f32.mrb[0].mxu0
      %537 = vmatprep.mubr.f32.mxu0 0.0
      %538 = vmatmul.mubr.f32.gmra.mrb[0].mxu0 %v402
      %v539 = vpop.f32.mrb[0].mxu0
      %v540 = vadd.f32 %v372, %v539
      %v541 = vpop.f32.mrb[0].mxu0
      %542 = vmatprep.mubr.f32.mxu0 0.0
      %543 = vmatmul.mubr.f32.gmra.mrb[0].mxu0 %v405
      %v544 = vpop.f32.mrb[0].mxu0
      %v545 = vadd.f32 %v372, %v544
      %v546 = vpop.f32.mrb[0].mxu0
      %547 = vmatprep.mubr.f32.mxu0 0.0
      %548 = vmatmul.mubr.f32.gmra.mrb[0].mxu0 %v408
      %v549 = vpop.f32.mrb[0].mxu0
      %v550 = vadd.f32 %v372, %v549
      %v551 = vpop.f32.mrb[0].mxu0
      %552 = vmatprep.mubr.f32.mxu0 0.0
      %553 = vmatmul.mubr.f32.gmra.mrb[0].mxu0 %v411
      %v554 = vpop.f32.mrb[0].mxu0
      %v555 = vadd.f32 %v372, %v554
      %v556 = vpop.f32.mrb[0].mxu0
      %557 = vmatprep.mubr.f32.mxu0 0.0
      %558 = vmatmul.mubr.f32.gmra.mrb[0].mxu0 %v414
      %v559 = vpop.f32.mrb[0].mxu0
      %v560 = vadd.f32 %v372, %v559
      %v561 = vpop.f32.mrb[0].mxu0
      %562 = vmatprep.mubr.f32.mxu0 0.0
      %563 = vmatmul.mubr.f32.gmra.mrb[0].mxu0 %v417
      %v564 = vpop.f32.mrb[0].mxu0
      %v565 = vadd.f32 %v372, %v564
      %v566 = vpop.f32.mrb[0].mxu0
      %567 = vmatprep.mubr.f32.mxu0 0.0
      %568 = vmatmul.mubr.f32.gmra.mrb[0].mxu0 %v420
      %v569 = vpop.f32.mrb[0].mxu0
      %v570 = vadd.f32 %v372, %v569
      %v571 = vpop.f32.mrb[0].mxu0
      %572 = vdwg.mxu0
      %v573 = vmax.f32 %v495, 0.0
      %v574 = vmax.f32 %v500, 0.0
      %v575 = vmax.f32 %v505, 0.0
      %v576 = vmax.f32 %v510, 0.0
      %v577 = vmax.f32 %v515, 0.0
      %v578 = vmax.f32 %v520, 0.0
      %v579 = vmax.f32 %v525, 0.0
      %v580 = vmax.f32 %v530, 0.0
      %v581 = vmax.f32 %v535, 0.0
      %v582 = vmax.f32 %v540, 0.0
      %v583 = vmax.f32 %v545, 0.0
      %v584 = vmax.f32 %v550, 0.0
      %v585 = vmax.f32 %v555, 0.0
      %v586 = vmax.f32 %v560, 0.0
      %v587 = vmax.f32 %v565, 0.0
      %v588 = vmax.f32 %v570, 0.0
      %vm589 = vcmask 130048
      %590 = vst.msk [vmem:[%s4] sm:$0xff] %vm589, %v573
      %591 = vst.msk [vmem:[%s4 + $0x8] sm:$0xff] %vm589, %v574
      %592 = vst.msk [vmem:[%s4 + $0x10] sm:$0xff] %vm589, %v575
      %593 = vst.msk [vmem:[%s4 + $0x18] sm:$0xff] %vm589, %v576
      %594 = vst.msk [vmem:[%s4 + $0x20] sm:$0xff] %vm589, %v577
      %595 = vst.msk [vmem:[%s4 + $0x28] sm:$0xff] %vm589, %v578
      %596 = vst.msk [vmem:[%s4 + $0x30] sm:$0xff] %vm589, %v579
      %597 = vst.msk [vmem:[%s4 + $0x38] sm:$0xff] %vm589, %v580
      %598 = vst.msk [vmem:[%s4 + $0x40] sm:$0xff] %vm589, %v581
      %599 = vst.msk [vmem:[%s4 + $0x48] sm:$0xff] %vm589, %v582
      %600 = vst.msk [vmem:[%s4 + $0x50] sm:$0xff] %vm589, %v583
      %601 = vst.msk [vmem:[%s4 + $0x58] sm:$0xff] %vm589, %v584
      %602 = vst.msk [vmem:[%s4 + $0x60] sm:$0xff] %vm589, %v585
      %603 = vst.msk [vmem:[%s4 + $0x68] sm:$0xff] %vm589, %v586
      %604 = vst.msk [vmem:[%s4 + $0x70] sm:$0xff] %vm589, %v587
      %605 = vst.msk [vmem:[%s4 + $0x78] sm:$0xff] %vm589, %v588
    $region21: #{tpu_custom_call.1} parent=1 // pred_fallthru
      _
    // Predicated region
    $region22: #{tpu_custom_call.1} parent=1 // pred_check
      _
    $region23: #{tpu_custom_call.1} parent=1 // pred_check_branch
      %607 = sbr.rel (0) target = $region25
    $region24: #{tpu_custom_call.1} parent=1 // pred_region
      _
    $region25: #{tpu_custom_call.1} parent=1 // pred_fallthru
      _
    // Predicated region
    $region26: #{tpu_custom_call.1} parent=1 // pred_check
      _
    $region27: #{tpu_custom_call.1} parent=1 // pred_check_branch
      %609 = sbr.rel (0) target = $region29
    $region28: #{tpu_custom_call.1} parent=1 // pred_region
      %s611 = ssub.s32 1024, 1024
      %612 = vsyncadd [#allocation3], %s611
      %s613 = sshll.u32 [#allocation2], 4
      %s614 = int_to_ptr.vmem [resolvable:$true] %s613
      %619 = dma.vmem_to_hbm [thread:$0]  %s614, 1024, %s5, [#allocation3], 64, 64, 4
    $region29: #{tpu_custom_call.1} parent=1 // pred_fallthru
      _
    // Predicated region
    $region30: #{tpu_custom_call.1} parent=1 // pred_check
      _
    $region31: #{tpu_custom_call.1} parent=1 // pred_check_branch
      %621 = sbr.rel (0) target = $region33
    $region32: #{tpu_custom_call.1} parent=1 // pred_region
      _
    $region33: #{tpu_custom_call.1} parent=1 // pred_fallthru
      _
    // Predicated region
    $region34: #{tpu_custom_call.1} parent=1 // pred_check
      _
    $region35: #{tpu_custom_call.1} parent=1 // pred_check_branch
      %623 = sbr.rel (0) target = $region37
    $region36: #{tpu_custom_call.1} parent=1 // pred_region
      %624 = dma.done [#allocation3], 1024
    $region37: #{tpu_custom_call.1} parent=1 // pred_fallthru
      _
    %625 = vsyncpa [#allocation3], 1

</llo_original>
